<compile_context>
chip_gen: v7x
topology: tpu7x:2x2x1
jax: 0.10.0
libtpu: 0.0.40
codegen_flags: <defaults>
</compile_context>

<pallas_src>
import math

import jax
import jax.numpy as jnp
from jax.experimental import pallas as pl
from jax.experimental.pallas import tpu as pltpu


def _round_up(x, m):
    return ((x + m - 1) // m) * m


def _pick_tile(dim, max_tile, align):
    """Largest tile <= max_tile (multiple of `align`), preferring a divisor of dim."""
    if dim <= max_tile:
        return _round_up(max(dim, 1), align)
    for t in range(max_tile, align - 1, -align):
        if dim % t == 0:
            return t
    return max_tile


def _make_kernel(*, transpose, normalize, use_scratch):
    """Kernel for one (i, j, k) grid step: acc[i, j] += x[i, k] @ W_eff[k, j]."""

    def kernel(*refs):
        if normalize:
            x_ref, w_ref, s_ref, *rest = refs
        else:
            x_ref, w_ref, *rest = refs
            s_ref = None
        o_ref = rest[0]
        acc_ref = rest[1] if use_scratch else o_ref   # f32 output accumulates in place

        @pl.when(pl.program_id(2) == 0)
        def _init():
            acc_ref[...] = jnp.zeros_like(acc_ref)

        x = x_ref[...]                                 # (tm, tk)
        w = w_ref[...]                                 # (tk, tn) or (tn, tk) if transpose
        if normalize and not transpose:
            # Per-k scale, lane-dense (1, tk); sublane broadcast over the x block.
            x = x * s_ref[...].astype(x.dtype)

        if transpose:
            # x: (tm, tk), w: (tn, tk) -> contract last dims (MXU trans_b), no relayout.
            acc_ref[...] += jax.lax.dot_general(
                x, w,
                dimension_numbers=(((1,), (1,)), ((), ())),
                preferred_element_type=jnp.float32)
        else:
            acc_ref[...] += jnp.dot(x, w, preferred_element_type=jnp.float32)

        needs_finalize = use_scratch or (normalize and transpose)
        if needs_finalize:
            @pl.when(pl.program_id(2) == pl.num_programs(2) - 1)
            def _finalize():
                result = acc_ref[...]
                if normalize and transpose:
                    # Per-output-column scale commutes with the K sum: apply once,
                    # in f32, to the accumulator.
                    result = result * s_ref[...]
                o_ref[...] = result.astype(o_ref.dtype)

    return kernel


def matrix_multiply_forward(x, tensor, *, transpose=False, normalize=False):
    """Pallas implementation of MatrixMultiply.forward."""
    lead = x.shape[:-1]
    K = x.shape[-1]
    M = math.prod(lead) if lead else 1

    if transpose:
        N, K_w = tensor.shape
    else:
        K_w, N = tensor.shape
    assert K_w == K, "inner dimensions must match for x @ tensor"

    # Explicit compute dtype: cast both operands so mixed dtypes never silently
    # promote to a multi-pass f32 MXU matmul.
    # TODO(synk): if the surrounding model tolerates it, force bf16 here (keeping
    # f32 accumulation via preferred_element_type) for full MXU rate on v6e/v7x.
    compute_dtype = jnp.result_type(x.dtype, tensor.dtype)
    out_dtype = compute_dtype

    x2 = x.reshape(M, K).astype(compute_dtype)
    w = tensor.astype(compute_dtype)

    # Tiny O(rows) row-norm reduction of F.normalize(dim=-1) stays as wrapper glue;
    # its application (a broadcast scale) is fused into the kernel, so a normalized
    # copy of the weight never round-trips HBM.
    if normalize:
        nrm = jnp.sqrt(jnp.sum(jnp.square(tensor.astype(jnp.float32)), axis=-1))
        inv_norm = 1.0 / jnp.maximum(nrm, 1e-12)       # matches F.normalize eps
    else:
        inv_norm = None

    # ---- tile sizes: large output tiles; extra-wide N/K when M is small (GEMV) ----
    small_m = M <= 256
    tm = _pick_tile(M, 512, 8)
    tn = _pick_tile(N, 1024 if small_m else 512, 128)
    tk = _pick_tile(K, 1024, 128)
    Mp, Kp, Np = _round_up(M, tm), _round_up(K, tk), _round_up(N, tn)

    # ---- zero-pad only when needed (zeros contribute nothing to the dot) ----
    x_p = x2 if (M, K) == (Mp, Kp) else (
        jnp.zeros((Mp, Kp), compute_dtype).at[:M, :K].set(x2))

    operands = [x_p]
    in_specs = [pl.BlockSpec((tm, tk), lambda i, j, k: (i, k))]

    if transpose:
        w_p = w if (N, K) == (Np, Kp) else (
            jnp.zeros((Np, Kp), compute_dtype).at[:N, :K].set(w))
        operands.append(w_p)
        in_specs.append(pl.BlockSpec((tn, tk), lambda i, j, k: (j, k)))
        if normalize:
            # Lane-dense per-output-column scale, consumed once at finalize.
            s_p = jnp.ones((1, Np), jnp.float32).at[0, :N].set(inv_norm)
            operands.append(s_p)
            in_specs.append(pl.BlockSpec((1, tn), lambda i, j, k: (0, j)))
    else:
        w_p = w if (K, N) == (Kp, Np) else (
            jnp.zeros((Kp, Np), compute_dtype).at[:K, :N].set(w))
        operands.append(w_p)
        in_specs.append(pl.BlockSpec((tk, tn), lambda i, j, k: (k, j)))
        if normalize:
            # Lane-dense per-k scale, applied to the x block (sublane broadcast).
            s_p = jnp.ones((1, Kp), jnp.float32).at[0, :K].set(inv_norm)
            operands.append(s_p)
            in_specs.append(pl.BlockSpec((1, tk), lambda i, j, k: (0, k)))

    use_scratch = out_dtype != jnp.float32
    scratch_shapes = [pltpu.VMEM((tm, tn), jnp.float32)] if use_scratch else []

    # Explicit scoped-VMEM budget from the real footprint (double-buffered tiles).
    itemsize = compute_dtype.itemsize
    est = 2 * (tm * tk + tk * tn) * itemsize + 2 * tm * tn * out_dtype.itemsize
    if use_scratch:
        est += tm * tn * 4
    if normalize:
        est += 2 * max(tk, tn) * 4
    vmem_limit = int(min(max(est * 5 // 4, 32 << 20), 60 << 20))

    kernel = _make_kernel(transpose=transpose, normalize=normalize,
                          use_scratch=use_scratch)

    out_p = pl.pallas_call(
        kernel,
        out_shape=jax.ShapeDtypeStruct((Mp, Np), out_dtype),
        grid_spec=pltpu.PrefetchScalarGridSpec(
            num_scalar_prefetch=0,
            grid=(Mp // tm, Np // tn, Kp // tk),
            in_specs=in_specs,
            out_specs=pl.BlockSpec((tm, tn), lambda i, j, k: (i, j)),
            scratch_shapes=scratch_shapes,
        ),
        compiler_params=pltpu.CompilerParams(
            dimension_semantics=("parallel", "parallel", "arbitrary"),
            vmem_limit_bytes=vmem_limit),
    )(*operands)

    out = out_p if (M, N) == (Mp, Np) else out_p[:M, :N]
    return out.reshape(*lead, N)


def _reference(x, tensor, transpose=False, normalize=False):
    """Pure-JAX mirror of the PyTorch forward."""
    t = tensor
    if normalize:
        n = jnp.sqrt(jnp.sum(t * t, axis=-1, keepdims=True))
        t = t / jnp.maximum(n, 1e-12)
    if transpose:
        t = t.T
    return x @ t


if __name__ == "__main__":
    key = jax.random.PRNGKey(0)
    kx, kt1, kt2, kx2, kt3 = jax.random.split(key, 5)

    # Small, unaligned shapes (exercise the zero-pad path).
    B, L, D, N = 2, 8, 32, 48
    x = jax.random.normal(kx, (B, L, D), dtype=jnp.float32)
    tensor_kn = jax.random.normal(kt1, (D, N), dtype=jnp.float32)    # transpose=False
    tensor_nk = jax.random.normal(kt2, (N, D), dtype=jnp.float32)    # transpose=True

    cases = [
        (x, tensor_kn, False, False),
        (x, tensor_kn, False, True),
        (x, tensor_nk, True, False),
        (x, tensor_nk, True, True),
    ]

    # Aligned shapes (exercise the pad-free fast path).
    D2, N2 = 128, 256
    x_al = jax.random.normal(kx2, (B, L, D2), dtype=jnp.float32)
    tensor_al = jax.random.normal(kt3, (D2, N2), dtype=jnp.float32)
    cases.append((x_al, tensor_al, False, True))
    cases.append((x_al, tensor_al, False, False))

    for xi, t, tr, nz in cases:
        got = matrix_multiply_forward(xi, t, transpose=tr, normalize=nz)
        jax.block_until_ready(got)
        want = _reference(xi, t, transpose=tr, normalize=nz)
        assert got.shape == want.shape, (got.shape, want.shape)
        assert jnp.allclose(got, want, atol=1e-4, rtol=1e-4), (
            f"mismatch for transpose={tr}, normalize={nz}")

    print("KERNEL_OK")
</pallas_src>

<mosaic_0001>
module attributes {stable_mosaic.version = 11 : i64} {
  func.func @kernel(%arg0: i32, %arg1: i32, %arg2: i32, %arg3: memref<16x128xf32, #tpu.memory_space<vmem>>, %arg4: memref<128x128xf32, #tpu.memory_space<vmem>>, %arg5: memref<16x128xf32, #tpu.memory_space<vmem>>) attributes {dimension_semantics = [#tpu.dimension_semantics<parallel>, #tpu.dimension_semantics<parallel>, #tpu.dimension_semantics<arbitrary>], iteration_bounds = array<i64: 1, 1, 1>, scalar_prefetch = 0 : i64, scratch_operands = 0 : i64, tpu.core_type = #tpu.core_type<tc>, window_params = [{transform_indices = @transform_0, window_bounds = array<i64: 16, 128>}, {transform_indices = @transform_1, window_bounds = array<i64: 128, 128>}, {transform_indices = @transform_2, window_bounds = array<i64: 16, 128>}]} {
    %c0_i32 = arith.constant 0 : i32
    %0 = arith.cmpi eq, %arg2, %c0_i32 : i32
    %1 = arith.extui %0 : i1 to i32
    %c0_i32_0 = arith.constant 0 : i32
    %2 = arith.cmpi ne, %1, %c0_i32_0 : i32
    scf.if %2 {
      %cst_8 = arith.constant 0.000000e+00 : f32
      %9 = vector.broadcast %cst_8 : f32 to vector<16x128xf32>
      %c0_9 = arith.constant 0 : index
      %c0_10 = arith.constant 0 : index
      %10 = vector.load %arg5[%c0_9, %c0_10] : memref<16x128xf32, #tpu.memory_space<vmem>>, vector<16x128xf32>
      tpu.vector_store %arg5[%c0_9, %c0_10], %9 {strides = array<i32>} : memref<16x128xf32, #tpu.memory_space<vmem>>, vector<16x128xf32>,
    } else {
    }
    %c0 = arith.constant 0 : index
    %c0_1 = arith.constant 0 : index
    %3 = vector.load %arg3[%c0, %c0_1] : memref<16x128xf32, #tpu.memory_space<vmem>>, vector<16x128xf32>
    %c0_2 = arith.constant 0 : index
    %c0_3 = arith.constant 0 : index
    %4 = vector.load %arg4[%c0_2, %c0_3] : memref<128x128xf32, #tpu.memory_space<vmem>>, vector<128x128xf32>
    %c0_4 = arith.constant 0 : index
    %c0_5 = arith.constant 0 : index
    %5 = vector.load %arg5[%c0_4, %c0_5] : memref<16x128xf32, #tpu.memory_space<vmem>>, vector<16x128xf32>
    %cst = arith.constant dense<0.000000e+00> : vector<16x128xf32>
    %6 = tpu.matmul %3, %4, %cst {dimension_numbers = #tpu.dot_dimension_numbers<[1], [0], [0], [1], [0, 0, 1, 1], [], []>} : vector<16x128xf32>, vector<128x128xf32>, vector<16x128xf32> -> vector<16x128xf32>
    %7 = arith.addf %5, %6 : vector<16x128xf32>
    %c0_6 = arith.constant 0 : index
    %c0_7 = arith.constant 0 : index
    %8 = vector.load %arg5[%c0_6, %c0_7] : memref<16x128xf32, #tpu.memory_space<vmem>>, vector<16x128xf32>
    tpu.vector_store %arg5[%c0_6, %c0_7], %7 {strides = array<i32>} : memref<16x128xf32, #tpu.memory_space<vmem>>, vector<16x128xf32>,
    return
  }
  func.func @transform_0(%arg0: i32, %arg1: i32, %arg2: i32) -> (i32, i32) {
    %c0_i32 = arith.constant 0 : i32
    return %arg0, %arg2 : i32, i32
  }
  func.func @transform_1(%arg0: i32, %arg1: i32, %arg2: i32) -> (i32, i32) {
    %c0_i32 = arith.constant 0 : i32
    return %arg2, %arg1 : i32, i32
  }
  func.func @transform_2(%arg0: i32, %arg1: i32, %arg2: i32) -> (i32, i32) {
    %c0_i32 = arith.constant 0 : i32
    return %arg0, %arg1 : i32, i32
  }
}

</mosaic_0001>

<llo_original>
// kernel: tpu_custom_call.1
$region0: #{tpu_custom_call.1}
  #allocation0 [shape = 'u32[]', space=smem, size = 0x4, offset = 0x4, fixed_abs, tag = 'smem constant byte address 0x4 - core index']
  #allocation1 [shape = 'u32[144,128]{1,0:T(1,128)}', space=vmem, size = 0x12000, scoped, tag = 'internal scratch']
  %s0 = inlined_call_operand.hbm [shape: f32[16,128], index: 0, kind: input, shape index: {}]
  %s1 = inlined_call_operand.hbm [shape: f32[128,128], index: 1, kind: input, shape index: {}]
  %s2 = inlined_call_operand.hbm [shape: f32[16,128], index: 2, kind: output, shape index: {}]
  %s3 = sld [smem:[#allocation0]]
  $region30: #{tpu_custom_call.1} parent=0
    _
  %s5 = ssub.s32 1, %s3
  %s6 = scalar_select 0, %s5, %s3
  $region1: #{tpu_custom_call.1} parent=0
    #allocation2 [shape = 'u8[8192]{0}', space=vmem, size = 0x2000, scoped, tag = 'input window, operand 0, single buffered']
    #allocation3 [shape = 's32[1]{0}', space=sflag, size = 0x4, scoped, tag = 'scoped memory for tpu_custom_call.1']
    #allocation4 [shape = 's32[1]{0}', space=sflag, size = 0x4, scoped, tag = 'scoped memory for tpu_custom_call.1']
    #allocation5 [shape = 'u8[65536]{0}', space=vmem, size = 0x10000, scoped, tag = 'input window, operand 1, single buffered']
    #allocation6 [shape = 's32[1]{0}', space=sflag, size = 0x4, scoped, tag = 'scoped memory for tpu_custom_call.1']
    #allocation7 [shape = 'u8[8192]{0}', space=vmem, size = 0x2000, scoped, tag = 'output window, operand 0, single buffered']
    %7 = vsyncpa [#allocation3], 0
    %8 = vsyncpa [#allocation6], 0
    %9 = vsyncpa [#allocation4], 0
    // Predicated region
    $region2: #{tpu_custom_call.1} parent=1 // pred_check
      _
    $region3: #{tpu_custom_call.1} parent=1 // pred_check_branch
      %11 = sbr.rel (0) target = $region5
    $region4: #{tpu_custom_call.1} parent=1 // pred_region
      %s13 = ssub.s32 256, 256
      %14 = vsyncadd [#allocation3], %s13
      %s15 = sshll.u32 [#allocation2], 4
      %s16 = int_to_ptr.vmem [resolvable:$true] %s15
      %21 = dma.hbm_to_vmem [thread:$0]  %s0, 256, %s16, [#allocation3], 128, 128, 8
    $region5: #{tpu_custom_call.1} parent=1 // pred_fallthru
      _
    // Predicated region
    $region6: #{tpu_custom_call.1} parent=1 // pred_check
      _
    $region7: #{tpu_custom_call.1} parent=1 // pred_check_branch
      %23 = sbr.rel (0) target = $region9
    $region8: #{tpu_custom_call.1} parent=1 // pred_region
      %s25 = ssub.s32 2048, 2048
      %26 = vsyncadd [#allocation6], %s25
      %s27 = sshll.u32 [#allocation5], 4
      %s28 = int_to_ptr.vmem [resolvable:$true] %s27
      %33 = dma.hbm_to_vmem [thread:$0]  %s1, 2048, %s28, [#allocation6], 128, 128, 8
    $region9: #{tpu_custom_call.1} parent=1 // pred_fallthru
      _
    // Predicated region
    $region10: #{tpu_custom_call.1} parent=1 // pred_check
      _
    $region11: #{tpu_custom_call.1} parent=1 // pred_check_branch
      %35 = sbr.rel (0) target = $region13
    $region12: #{tpu_custom_call.1} parent=1 // pred_region
      %36 = dma.done [#allocation3], 256
    $region13: #{tpu_custom_call.1} parent=1 // pred_fallthru
      _
    // Predicated region
    $region14: #{tpu_custom_call.1} parent=1 // pred_check
      _
    $region15: #{tpu_custom_call.1} parent=1 // pred_check_branch
      %38 = sbr.rel (0) target = $region17
    $region16: #{tpu_custom_call.1} parent=1 // pred_region
      %39 = dma.done [#allocation6], 2048
    $region17: #{tpu_custom_call.1} parent=1 // pred_fallthru
      _
    %p40 = scmp.eq.s32.totalorder 0, 0
    // Predicated region
    $region18: #{tpu_custom_call.1} parent=1 // pred_check
      %p41 = pneg %p40
    $region19: #{tpu_custom_call.1} parent=1 // pred_check_branch
      %43 = sbr.rel (%p41) target = $region21
    $region20: #{tpu_custom_call.1} parent=1 // pred_region
      %44 = vst [vmem:[#allocation7] sm:$0xff] 0.0
      %45 = vst [vmem:[#allocation7 + $0x8] sm:$0xff] 0.0
    $region21: #{tpu_custom_call.1} parent=1 // pred_fallthru
      _
    %v46 = vld [vmem:[#allocation2] sm:$0xff]
    %v47 = vld [vmem:[#allocation2 + $0x8] sm:$0xff]
    %v48 = vld [vmem:[#allocation5] sm:$0xff]
    %v49 = vld [vmem:[#allocation5 + $0x8] sm:$0xff]
    %v50 = vld [vmem:[#allocation5 + $0x10] sm:$0xff]
    %v51 = vld [vmem:[#allocation5 + $0x18] sm:$0xff]
    %v52 = vld [vmem:[#allocation5 + $0x20] sm:$0xff]
    %v53 = vld [vmem:[#allocation5 + $0x28] sm:$0xff]
    %v54 = vld [vmem:[#allocation5 + $0x30] sm:$0xff]
    %v55 = vld [vmem:[#allocation5 + $0x38] sm:$0xff]
    %v56 = vld [vmem:[#allocation5 + $0x40] sm:$0xff]
    %v57 = vld [vmem:[#allocation5 + $0x48] sm:$0xff]
    %v58 = vld [vmem:[#allocation5 + $0x50] sm:$0xff]
    %v59 = vld [vmem:[#allocation5 + $0x58] sm:$0xff]
    %v60 = vld [vmem:[#allocation5 + $0x60] sm:$0xff]
    %v61 = vld [vmem:[#allocation5 + $0x68] sm:$0xff]
    %v62 = vld [vmem:[#allocation5 + $0x70] sm:$0xff]
    %v63 = vld [vmem:[#allocation5 + $0x78] sm:$0xff]
    %v64 = vld [vmem:[#allocation7] sm:$0xff]
    %v65 = vld [vmem:[#allocation7 + $0x8] sm:$0xff]
    %66 = vmatprep.subr.mxu0 0.0
    %67 = vmatpush1.msra.mxu0 %v48
    %68 = vmatprep.subr.mxu0 0.0
    %69 = vmatpush1.msra.mxu0 %v49
    %70 = vmatprep.subr.mxu0 0.0
    %71 = vmatpush1.msra.mxu0 %v50
    %72 = vmatprep.subr.mxu0 0.0
    %73 = vmatpush1.msra.mxu0 %v51
    %74 = vmatprep.subr.mxu0 0.0
    %75 = vmatpush1.msra.mxu0 %v52
    %76 = vmatprep.subr.mxu0 0.0
    %77 = vmatpush1.msra.mxu0 %v53
    %78 = vmatprep.subr.mxu0 0.0
    %79 = vmatpush1.msra.mxu0 %v54
    %80 = vmatprep.subr.mxu0 0.0
    %81 = vmatpush1.msra.mxu0 %v55
    %82 = vmatprep.subr.mxu0 0.0
    %83 = vmatpush1.msra.mxu0 %v56
    %84 = vmatprep.subr.mxu0 0.0
    %85 = vmatpush1.msra.mxu0 %v57
    %86 = vmatprep.subr.mxu0 0.0
    %87 = vmatpush1.msra.mxu0 %v58
    %88 = vmatprep.subr.mxu0 0.0
    %89 = vmatpush1.msra.mxu0 %v59
    %90 = vmatprep.subr.mxu0 0.0
    %91 = vmatpush1.msra.mxu0 %v60
    %92 = vmatprep.subr.mxu0 0.0
    %93 = vmatpush1.msra.mxu0 %v61
    %94 = vmatprep.subr.mxu0 0.0
    %95 = vmatpush1.msra.mxu0 %v62
    %96 = vmatprep.subr.mxu0 0.0
    %97 = vmatpush1.msra.mxu0 %v63
    %98 = vmatprep.subr.mxu0 0.0
    %99 = vmatpush1.msra.mxu0 0.0
    %100 = vmatprep.subr.mxu0 0.0
    %101 = vmatpush1.msra.mxu0 0.0
    %102 = vmatprep.subr.mxu0 0.0
    %103 = vmatpush1.msra.mxu0 0.0
    %104 = vmatprep.subr.mxu0 0.0
    %105 = vmatpush1.msra.mxu0 0.0
    %106 = vmatprep.subr.mxu0 0.0
    %107 = vmatpush1.msra.mxu0 0.0
    %108 = vmatprep.subr.mxu0 0.0
    %109 = vmatpush1.msra.mxu0 0.0
    %110 = vmatprep.subr.mxu0 0.0
    %111 = vmatpush1.msra.mxu0 0.0
    %112 = vmatprep.subr.mxu0 0.0
    %113 = vmatpush1.msra.mxu0 0.0
    %114 = vmatprep.subr.mxu0 0.0
    %115 = vmatpush1.msra.mxu0 0.0
    %116 = vmatprep.subr.mxu0 0.0
    %117 = vmatpush1.msra.mxu0 0.0
    %118 = vmatprep.subr.mxu0 0.0
    %119 = vmatpush1.msra.mxu0 0.0
    %120 = vmatprep.subr.mxu0 0.0
    %121 = vmatpush1.msra.mxu0 0.0
    %122 = vmatprep.subr.mxu0 0.0
    %123 = vmatpush1.msra.mxu0 0.0
    %124 = vmatprep.subr.mxu0 0.0
    %125 = vmatpush1.msra.mxu0 0.0
    %126 = vmatprep.subr.mxu0 0.0
    %127 = vmatpush1.msra.mxu0 0.0
    %128 = vmatprep.subr.mxu0 0.0
    %129 = vmatpush1.msra.mxu0 0.0
    %130 = vmatprep.mubr.f32.mxu0 0.0
    %131 = vmatmul.mubr.f32.gmra.mrb[0].mxu0 %v46
    %v132 = vpop.f32.mrb[0].mxu0
    %v133 = vadd.f32 0.0, %v132
    %v134 = vpop.f32.mrb[0].mxu0
    %135 = vmatprep.mubr.f32.mxu0 0.0
    %136 = vmatmul.mubr.f32.gmra.mrb[0].mxu0 %v47
    %v137 = vpop.f32.mrb[0].mxu0
    %v138 = vadd.f32 0.0, %v137
    %v139 = vpop.f32.mrb[0].mxu0
    %140 = vdwg.mxu0
    %v141 = vadd.f32 %v64, %v133
    %v142 = vadd.f32 %v65, %v138
    %143 = vst [vmem:[#allocation7] sm:$0xff] %v141
    %144 = vst [vmem:[#allocation7 + $0x8] sm:$0xff] %v142
    // Predicated region
    $region22: #{tpu_custom_call.1} parent=1 // pred_check
      _
    $region23: #{tpu_custom_call.1} parent=1 // pred_check_branch
      %146 = sbr.rel (0) target = $region25
    $region24: #{tpu_custom_call.1} parent=1 // pred_region
      %s148 = ssub.s32 256, 256
      %149 = vsyncadd [#allocation4], %s148
      %s150 = sshll.u32 [#allocation7], 4
      %s151 = int_to_ptr.vmem [resolvable:$true] %s150
      %156 = dma.vmem_to_hbm [thread:$0]  %s151, 256, %s2, [#allocation4], 128, 128, 8
    $region25: #{tpu_custom_call.1} parent=1 // pred_fallthru
      _
    // Predicated region
    $region26: #{tpu_custom_call.1} parent=1 // pred_check
      _
    $region27: #{tpu_custom_call.1} parent=1 // pred_check_branch
      %158 = sbr.rel (0) target = $region29
    $region28: #{tpu_custom_call.1} parent=1 // pred_region
      %159 = dma.done [#allocation4], 256
    $region29: #{tpu_custom_call.1} parent=1 // pred_fallthru
      _
    %160 = vsyncpa [#allocation3], 1
    %161 = vsyncpa [#allocation6], 1
    %162 = vsyncpa [#allocation4], 1

</llo_original>
